<compile_context>
chip_gen: v5e
topology: v5e:2x2
jax: 0.10.0
libtpu: 0.0.40
codegen_flags: <defaults>
</compile_context>

<pallas_src>
import jax
import jax.numpy as jnp
from jax.experimental import pallas as pl
from jax.experimental.pallas import tpu as pltpu


def _round_up(x, m):
    return ((x + m - 1) // m) * m


def _choose_tile_b(B):
    """Batch tile: multiple of 8 (single block) or 128 (multi block), <= 1024."""
    if B <= 128:
        return _round_up(max(B, 8), 8)          # one block, minimal batch padding
    # >= 2 blocks so a v7x second TensorCore gets work; tile a multiple of 128
    # because batch sits on the lane axis of the transposed output.
    return min(1024, _round_up(pl.cdiv(B, 2), 128))


def _make_kernel(ip_loc_dim, transpose_out):
    def kernel(inp_ref, wl_ref, bl_ref, wc_loc_ref, wc_feat_ref, bc_ref, out_ref):
        # Single input stream [TB, ip_loc_dim + feats_dim]; split by value slicing.
        inp = inp_ref[...]
        loc = inp[:, :ip_loc_dim]
        feat = inp[:, ip_loc_dim:]

        # fc_loc: z = loc @ W_loc^T + b_loc  (bf16 operands, f32 accumulate)
        z = jnp.dot(loc, wl_ref[...], preferred_element_type=jnp.float32) + bl_ref[...]
        x = jax.nn.sigmoid(z)                                   # f32 (EUP)

        # fc_class on cat((x, net_feat), 1) == x @ Wc[:, :loc_dim]^T
        #                                    + net_feat @ Wc[:, loc_dim:]^T + bc
        logits = (jnp.dot(x.astype(wc_loc_ref.dtype), wc_loc_ref[...],
                          preferred_element_type=jnp.float32)
                  + jnp.dot(feat, wc_feat_ref[...],
                            preferred_element_type=jnp.float32)
                  + bc_ref[...])                                # [TB, nc_pad] f32

        # log_softmax in f32; -1e30 padded bias => padded cols contribute exp()=0.
        m = jnp.max(logits, axis=1, keepdims=True)
        shifted = logits - m
        lse = jnp.log(jnp.sum(jnp.exp(shifted), axis=1, keepdims=True))
        logp = shifted - lse                                    # [TB, nc_pad] f32

        if transpose_out:
            # Lane-dense transposed store: [num_classes, TB], bf16.
            nc = out_ref.shape[0]
            out_ref[...] = jnp.transpose(logp)[:nc, :].astype(out_ref.dtype)
        else:
            out_ref[...] = logp.astype(out_ref.dtype)
    return kernel


def prepare_params(params, compute_dtype=jnp.bfloat16):
    """One-time weight prep: transpose, class-pad, bf16 cast. Cache the result."""
    w_loc, b_loc = params["w_loc"], params["b_loc"]
    w_class, b_class = params["w_class"], params["b_class"]
    loc_dim, ip_loc_dim = w_loc.shape
    num_classes = w_class.shape[0]
    feats_dim = w_class.shape[1] - loc_dim

    nc_pad = _round_up(max(num_classes, 128), 128)
    pad_c = nc_pad - num_classes
    return {
        "ip_loc_dim": ip_loc_dim, "feats_dim": feats_dim,
        "loc_dim": loc_dim, "num_classes": num_classes, "nc_pad": nc_pad,
        "wl_t": w_loc.T.astype(compute_dtype),                           # [ip, loc]
        "bl": b_loc.reshape(1, -1).astype(jnp.float32),                  # [1, loc]
        "wc_loc_t": jnp.pad(w_class[:, :loc_dim],
                            ((0, pad_c), (0, 0))).T.astype(compute_dtype),   # [loc, nc_pad]
        "wc_feat_t": jnp.pad(w_class[:, loc_dim:],
                             ((0, pad_c), (0, 0))).T.astype(compute_dtype),  # [feat, nc_pad]
        # -1e30 in f32 only: exp underflows to exactly 0 in the softmax.
        "bc": jnp.pad(b_class, (0, pad_c),
                      constant_values=-1e30).reshape(1, -1).astype(jnp.float32),
    }


def tangnet_forward(loc, net_feat, prep, use_loc=True,
                    compute_dtype=jnp.bfloat16, out_dtype=jnp.bfloat16):
    """loc: [B, ip_loc_dim], net_feat: [B, feats_dim] -> log-probs [B, num_classes] (out_dtype)."""
    if not use_loc:
        # TODO(synk): use_loc=False path (single Linear + log_softmax) not exercised here.
        raise NotImplementedError("only use_loc=True path implemented")

    B = loc.shape[0]
    ip, fd = prep["ip_loc_dim"], prep["feats_dim"]
    nc, nc_pad, loc_dim = prep["num_classes"], prep["nc_pad"], prep["loc_dim"]
    width = ip + fd

    TB = _choose_tile_b(B)
    n_blocks = pl.cdiv(B, TB)
    padded_b = n_blocks * TB

    # One bf16 input stream; pad batch once.
    inp = jnp.concatenate([loc.astype(compute_dtype),
                           net_feat.astype(compute_dtype)], axis=1)
    if padded_b != B:
        inp = jnp.pad(inp, ((0, padded_b - B), (0, 0)))

    # Transposed lane-dense output whenever lane-padding classes would >=2x the writes.
    transpose_out = nc_pad >= 2 * nc
    kernel = _make_kernel(ip, transpose_out)

    def resident(arr):   # weights/biases: constant block -> stays VMEM-resident
        return pl.BlockSpec(arr.shape, lambda i: (0, 0))

    in_specs = [
        pl.BlockSpec((TB, width), lambda i: (i, 0)),   # [loc | net_feat] tile
        resident(prep["wl_t"]), resident(prep["bl"]),
        resident(prep["wc_loc_t"]), resident(prep["wc_feat_t"]), resident(prep["bc"]),
    ]

    esize_out = jnp.dtype(out_dtype).itemsize
    esize_in = jnp.dtype(compute_dtype).itemsize
    if transpose_out:
        out_shape = jax.ShapeDtypeStruct((nc, padded_b), out_dtype)
        out_spec = pl.BlockSpec((nc, TB), lambda i: (0, i))
        out_tile_bytes = nc * TB * esize_out
        out_total_bytes = nc * padded_b * esize_out
    else:
        out_shape = jax.ShapeDtypeStruct((padded_b, nc_pad), out_dtype)
        out_spec = pl.BlockSpec((TB, nc_pad), lambda i: (i, 0))
        out_tile_bytes = TB * nc_pad * esize_out
        out_total_bytes = padded_b * nc_pad * esize_out

    weight_keys = ("wl_t", "bl", "wc_loc_t", "wc_feat_t", "bc")
    weights_bytes = sum(int(prep[k].size) * prep[k].dtype.itemsize for k in weight_keys)
    in_total_bytes = padded_b * width * esize_in

    cost = pl.CostEstimate(
        flops=int(2 * padded_b * (ip * loc_dim + (loc_dim + fd) * nc_pad)),
        transcendentals=int(padded_b * (loc_dim + nc_pad + 1)),
        bytes_accessed=int(in_total_bytes + weights_bytes + out_total_bytes),
    )

    # Explicit VMEM budget: 2x double-buffered resident weights + 2x in/out tiles
    # + f32 intermediates, with headroom; clamped to v7x's 64 MiB physical VMEM.
    in_tile_bytes = TB * width * esize_in
    f32_tmp_bytes = 3 * TB * nc_pad * 4
    vmem_budget = (2 * weights_bytes + 2 * (in_tile_bytes + out_tile_bytes)
                   + f32_tmp_bytes + (4 << 20))
    vmem_limit = int(min(max(vmem_budget, 32 << 20), 64 << 20))

    out = pl.pallas_call(
        kernel,
        out_shape=out_shape,
        grid=(n_blocks,),
        in_specs=in_specs,
        out_specs=out_spec,
        compiler_params=pltpu.CompilerParams(
            dimension_semantics=("parallel",),
            vmem_limit_bytes=vmem_limit),
        cost_estimate=cost,
    )(inp, prep["wl_t"], prep["bl"], prep["wc_loc_t"], prep["wc_feat_t"], prep["bc"])

    if transpose_out:
        # Output is tiny ([nc, padded_b] bf16); the slice+transpose back is cheap.
        return out[:, :B].T
    return out[:B, :nc]


def init_params(key, ip_loc_dim, feats_dim, loc_dim, num_classes):
    k1, k2, k3, k4 = jax.random.split(key, 4)

    def unif(k, shape, fan_in):
        bound = 1.0 / jnp.sqrt(fan_in)
        return jax.random.uniform(k, shape, jnp.float32, -bound, bound)

    return {
        "w_loc": unif(k1, (loc_dim, ip_loc_dim), ip_loc_dim),
        "b_loc": unif(k2, (loc_dim,), ip_loc_dim),
        "w_class": unif(k3, (num_classes, feats_dim + loc_dim), feats_dim + loc_dim),
        "b_class": unif(k4, (num_classes,), feats_dim + loc_dim),
    }


def tangnet_reference(loc, net_feat, params, compute_dtype=jnp.bfloat16):
    """Pure-JAX reference mirroring the kernel's bf16 input/weight quantization."""
    f32 = jnp.float32

    def q(a):
        return a.astype(compute_dtype).astype(f32)

    x = jax.nn.sigmoid(q(loc) @ q(params["w_loc"]).T + params["b_loc"])
    x = q(x)  # kernel casts the sigmoid output to compute_dtype before the 2nd matmul
    cat = jnp.concatenate([x, q(net_feat)], axis=1)
    logits = cat @ q(params["w_class"]).T + params["b_class"]
    return jax.nn.log_softmax(logits, axis=1)


if __name__ == "__main__":
    B, ip_loc_dim, feats_dim, loc_dim, num_classes = 2, 8, 32, 16, 10

    key = jax.random.PRNGKey(0)
    kp, kl, kf = jax.random.split(key, 3)
    params = init_params(kp, ip_loc_dim, feats_dim, loc_dim, num_classes)
    loc = jax.random.normal(kl, (B, ip_loc_dim), jnp.float32)
    net_feat = jax.random.normal(kf, (B, feats_dim), jnp.float32)

    prep = prepare_params(params)                      # one-time weight prep (cacheable)
    out = tangnet_forward(loc, net_feat, prep, use_loc=True)
    out = jax.block_until_ready(out)

    ref = tangnet_reference(loc, net_feat, params)
    assert out.shape == (B, num_classes)
    # Output is stored in bf16 (perf); compare with bf16-appropriate tolerance.
    assert jnp.allclose(out.astype(jnp.float32), ref, atol=5e-2, rtol=2e-2), \
        "mismatch vs reference"

    print("KERNEL_OK")
</pallas_src>

<mosaic_0001>
module attributes {stable_mosaic.version = 11 : i64} {
  func.func @kernel(%arg0: i32, %arg1: memref<8x40xbf16, #tpu.memory_space<vmem>>, %arg2: memref<8x16xbf16, #tpu.memory_space<vmem>>, %arg3: memref<1x16xf32, #tpu.memory_space<vmem>>, %arg4: memref<16x128xbf16, #tpu.memory_space<vmem>>, %arg5: memref<32x128xbf16, #tpu.memory_space<vmem>>, %arg6: memref<1x128xf32, #tpu.memory_space<vmem>>, %arg7: memref<10x8xbf16, #tpu.memory_space<vmem>>) attributes {dimension_semantics = [#tpu.dimension_semantics<parallel>], iteration_bounds = array<i64: 1>, scalar_prefetch = 0 : i64, scratch_operands = 0 : i64, tpu.core_type = #tpu.core_type<tc>, window_params = [{transform_indices = @transform_0, window_bounds = array<i64: 8, 40>}, {pipeline_mode = #tpu.pipeline_mode<synchronous>, transform_indices = @transform_1, window_bounds = array<i64: 8, 16>}, {pipeline_mode = #tpu.pipeline_mode<synchronous>, transform_indices = @transform_2, window_bounds = array<i64: 1, 16>}, {pipeline_mode = #tpu.pipeline_mode<synchronous>, transform_indices = @transform_3, window_bounds = array<i64: 16, 128>}, {pipeline_mode = #tpu.pipeline_mode<synchronous>, transform_indices = @transform_4, window_bounds = array<i64: 32, 128>}, {pipeline_mode = #tpu.pipeline_mode<synchronous>, transform_indices = @transform_5, window_bounds = array<i64: 1, 128>}, {transform_indices = @transform_6, window_bounds = array<i64: 10, 8>}]} {
    %c0 = arith.constant 0 : index
    %c0_0 = arith.constant 0 : index
    %0 = vector.load %arg1[%c0, %c0_0] : memref<8x40xbf16, #tpu.memory_space<vmem>>, vector<8x40xbf16>
    %1 = vector.extract_strided_slice %0 {offsets = [0, 0], sizes = [8, 8], strides = [1, 1]} : vector<8x40xbf16> to vector<8x8xbf16>
    %2 = vector.extract_strided_slice %0 {offsets = [0, 8], sizes = [8, 32], strides = [1, 1]} : vector<8x40xbf16> to vector<8x32xbf16>
    %c0_1 = arith.constant 0 : index
    %c0_2 = arith.constant 0 : index
    %3 = vector.load %arg2[%c0_1, %c0_2] : memref<8x16xbf16, #tpu.memory_space<vmem>>, vector<8x16xbf16>
    %cst = arith.constant dense<0.000000e+00> : vector<8x16xf32>
    %4 = tpu.matmul %1, %3, %cst {dimension_numbers = #tpu.dot_dimension_numbers<[1], [0], [0], [1], [0, 0, 1, 1], [], []>} : vector<8x8xbf16>, vector<8x16xbf16>, vector<8x16xf32> -> vector<8x16xf32>
    %c0_3 = arith.constant 0 : index
    %c0_4 = arith.constant 0 : index
    %5 = vector.load %arg3[%c0_3, %c0_4] : memref<1x16xf32, #tpu.memory_space<vmem>>, vector<1x16xf32>
    %6 = vector.broadcast %5 : vector<1x16xf32> to vector<8x16xf32>
    %7 = arith.addf %4, %6 : vector<8x16xf32>
    %8 = arith.negf %7 : vector<8x16xf32>
    %9 = math.exp %8 : vector<8x16xf32>
    %cst_5 = arith.constant 1.000000e+00 : f32
    %10 = vector.broadcast %cst_5 : f32 to vector<8x16xf32>
    %11 = arith.addf %10, %9 : vector<8x16xf32>
    %12 = arith.divf %10, %11 : vector<8x16xf32>
    %13 = arith.truncf %12 : vector<8x16xf32> to vector<8x16xbf16>
    %c0_6 = arith.constant 0 : index
    %c0_7 = arith.constant 0 : index
    %14 = vector.load %arg4[%c0_6, %c0_7] : memref<16x128xbf16, #tpu.memory_space<vmem>>, vector<16x128xbf16>
    %cst_8 = arith.constant dense<0.000000e+00> : vector<8x128xf32>
    %15 = tpu.matmul %13, %14, %cst_8 {dimension_numbers = #tpu.dot_dimension_numbers<[1], [0], [0], [1], [0, 0, 1, 1], [], []>} : vector<8x16xbf16>, vector<16x128xbf16>, vector<8x128xf32> -> vector<8x128xf32>
    %c0_9 = arith.constant 0 : index
    %c0_10 = arith.constant 0 : index
    %16 = vector.load %arg5[%c0_9, %c0_10] : memref<32x128xbf16, #tpu.memory_space<vmem>>, vector<32x128xbf16>
    %cst_11 = arith.constant dense<0.000000e+00> : vector<8x128xf32>
    %17 = tpu.matmul %2, %16, %cst_11 {dimension_numbers = #tpu.dot_dimension_numbers<[1], [0], [0], [1], [0, 0, 1, 1], [], []>} : vector<8x32xbf16>, vector<32x128xbf16>, vector<8x128xf32> -> vector<8x128xf32>
    %18 = arith.addf %15, %17 : vector<8x128xf32>
    %c0_12 = arith.constant 0 : index
    %c0_13 = arith.constant 0 : index
    %19 = vector.load %arg6[%c0_12, %c0_13] : memref<1x128xf32, #tpu.memory_space<vmem>>, vector<1x128xf32>
    %20 = vector.broadcast %19 : vector<1x128xf32> to vector<8x128xf32>
    %21 = arith.addf %18, %20 : vector<8x128xf32>
    %cst_14 = arith.constant dense<0xFF800000> : vector<8xf32>
    %22 = vector.multi_reduction <maximumf>, %21, %cst_14 [1] : vector<8x128xf32> to vector<8xf32>
    %23 = vector.shape_cast %22 : vector<8xf32> to vector<8x1xf32>
    %24 = vector.broadcast %23 : vector<8x1xf32> to vector<8x128xf32>
    %25 = arith.subf %21, %24 : vector<8x128xf32>
    %26 = math.exp %25 : vector<8x128xf32>
    %cst_15 = arith.constant dense<0.000000e+00> : vector<8xf32>
    %27 = vector.multi_reduction <add>, %26, %cst_15 [1] : vector<8x128xf32> to vector<8xf32>
    %28 = vector.shape_cast %27 : vector<8xf32> to vector<8x1xf32>
    %29 = math.log %28 : vector<8x1xf32>
    %30 = vector.broadcast %29 : vector<8x1xf32> to vector<8x128xf32>
    %31 = arith.subf %25, %30 : vector<8x128xf32>
    %32 = tpu.transpose %31, [1, 0] : vector<8x128xf32> -> vector<128x8xf32>
    %33 = vector.extract_strided_slice %32 {offsets = [0, 0], sizes = [10, 8], strides = [1, 1]} : vector<128x8xf32> to vector<10x8xf32>
    %34 = arith.truncf %33 : vector<10x8xf32> to vector<10x8xbf16>
    %c0_16 = arith.constant 0 : index
    %c0_17 = arith.constant 0 : index
    %35 = vector.load %arg7[%c0_16, %c0_17] : memref<10x8xbf16, #tpu.memory_space<vmem>>, vector<10x8xbf16>
    tpu.vector_store %arg7[%c0_16, %c0_17], %34 {strides = array<i32>} : memref<10x8xbf16, #tpu.memory_space<vmem>>, vector<10x8xbf16>,
    return
  }
  func.func @transform_0(%arg0: i32) -> (i32, i32) {
    %c0_i32 = arith.constant 0 : i32
    %c0_i32_0 = arith.constant 0 : i32
    return %arg0, %c0_i32 : i32, i32
  }
  func.func @transform_1(%arg0: i32) -> (i32, i32) {
    %c0_i32 = arith.constant 0 : i32
    %c0_i32_0 = arith.constant 0 : i32
    %c0_i32_1 = arith.constant 0 : i32
    return %c0_i32, %c0_i32_0 : i32, i32
  }
  func.func @transform_2(%arg0: i32) -> (i32, i32) {
    %c0_i32 = arith.constant 0 : i32
    %c0_i32_0 = arith.constant 0 : i32
    %c0_i32_1 = arith.constant 0 : i32
    return %c0_i32, %c0_i32_0 : i32, i32
  }
  func.func @transform_3(%arg0: i32) -> (i32, i32) {
    %c0_i32 = arith.constant 0 : i32
    %c0_i32_0 = arith.constant 0 : i32
    %c0_i32_1 = arith.constant 0 : i32
    return %c0_i32, %c0_i32_0 : i32, i32
  }
  func.func @transform_4(%arg0: i32) -> (i32, i32) {
    %c0_i32 = arith.constant 0 : i32
    %c0_i32_0 = arith.constant 0 : i32
    %c0_i32_1 = arith.constant 0 : i32
    return %c0_i32, %c0_i32_0 : i32, i32
  }
  func.func @transform_5(%arg0: i32) -> (i32, i32) {
    %c0_i32 = arith.constant 0 : i32
    %c0_i32_0 = arith.constant 0 : i32
    %c0_i32_1 = arith.constant 0 : i32
    return %c0_i32, %c0_i32_0 : i32, i32
  }
  func.func @transform_6(%arg0: i32) -> (i32, i32) {
    %c0_i32 = arith.constant 0 : i32
    %c0_i32_0 = arith.constant 0 : i32
    return %c0_i32, %arg0 : i32, i32
  }
}

</mosaic_0001>

<llo_original>
// kernel: tpu_custom_call.1
$region0: #{tpu_custom_call.1}
  #allocation0 [shape = 'u32[]', space=smem, size = 0x4, offset = 0x4, fixed_abs, tag = 'smem constant byte address 0x4 - core index']
  #allocation1 [shape = 'u32[72,128]{1,0:T(1,128)}', space=vmem, size = 0x9000, scoped, tag = 'internal scratch']
  %s0 = inlined_call_operand.hbm [shape: bf16[8,40], index: 0, kind: input, shape index: {}]
  %s1 = inlined_call_operand.hbm [shape: bf16[8,16], index: 1, kind: input, shape index: {}]
  %s2 = inlined_call_operand.vmem [shape: f32[1,16], index: 2, kind: input, shape index: {}]
  %s3 = inlined_call_operand.hbm [shape: bf16[16,128], index: 3, kind: input, shape index: {}]
  %s4 = inlined_call_operand.hbm [shape: bf16[32,128], index: 4, kind: input, shape index: {}]
  %s5 = inlined_call_operand.vmem [shape: f32[1,128], index: 5, kind: input, shape index: {}]
  %s6 = inlined_call_operand.vmem [shape: bf16[10,8], index: 6, kind: output, shape index: {}]
  %s7 = sld [smem:[#allocation0]]
  $region50: #{tpu_custom_call.1} parent=0
    _
  %s9 = ssub.s32 1, %s7
  %s10 = scalar_select 0, %s9, %s7
  $region1: #{tpu_custom_call.1} parent=0
    #allocation2 [shape = 'u8[2048]{0}', space=vmem, size = 0x800, scoped, tag = 'input window, operand 0, single buffered']
    #allocation3 [shape = 's32[1]{0}', space=sflag, size = 0x4, scoped, tag = 'scoped memory for tpu_custom_call.1']
    #allocation4 [shape = 'u8[2048]{0}', space=vmem, size = 0x800, scoped, tag = 'input window, operand 1, single buffered']
    #allocation5 [shape = 's32[1]{0}', space=sflag, size = 0x4, scoped, tag = 'scoped memory for tpu_custom_call.1']
    #allocation6 [shape = 'u8[4096]{0}', space=vmem, size = 0x1000, scoped, tag = 'input window, operand 3, single buffered']
    #allocation7 [shape = 'u8[8192]{0}', space=vmem, size = 0x2000, scoped, tag = 'input window, operand 4, single buffered']
    #allocation8 [shape = 's32[1]{0}', space=sflag, size = 0x4, scoped, tag = 'scoped memory for tpu_custom_call.1']
    %11 = vsyncpa [#allocation3], 0
    %12 = vsyncpa [#allocation5], 0
    %13 = vsyncpa [#allocation8], 0
    // Predicated region
    $region2: #{tpu_custom_call.1} parent=1 // pred_check
      _
    $region3: #{tpu_custom_call.1} parent=1 // pred_check_branch
      %15 = sbr.rel (0) target = $region5
    $region4: #{tpu_custom_call.1} parent=1 // pred_region
      %17 = vsyncadd [#allocation3], 0
      %s19 = sshll.u32 %s0, 4
      %s20 = int_to_ptr.hbm [resolvable:$true] %s19
      %s21 = sshll.u32 [#allocation2], 4
      %s22 = int_to_ptr.vmem [resolvable:$true] %s21
      %24 = dma.hbm_to_vmem [thread:$0]  %s20, 64, %s22, [#allocation3]
    $region5: #{tpu_custom_call.1} parent=1 // pred_fallthru
      _
    // Predicated region
    $region6: #{tpu_custom_call.1} parent=1 // pred_check
      _
    $region7: #{tpu_custom_call.1} parent=1 // pred_check_branch
      %26 = sbr.rel (0) target = $region9
    $region8: #{tpu_custom_call.1} parent=1 // pred_region
      %28 = vsyncadd [#allocation5], 0
      %s30 = sshll.u32 %s1, 4
      %s31 = int_to_ptr.hbm [resolvable:$true] %s30
      %s32 = sshll.u32 [#allocation4], 4
      %s33 = int_to_ptr.vmem [resolvable:$true] %s32
      %35 = dma.hbm_to_vmem [thread:$0]  %s31, 64, %s33, [#allocation5]
    $region9: #{tpu_custom_call.1} parent=1 // pred_fallthru
      _
    // Predicated region
    $region10: #{tpu_custom_call.1} parent=1 // pred_check
      _
    $region11: #{tpu_custom_call.1} parent=1 // pred_check_branch
      %37 = sbr.rel (0) target = $region13
    $region12: #{tpu_custom_call.1} parent=1 // pred_region
      _
    $region13: #{tpu_custom_call.1} parent=1 // pred_fallthru
      _
    // Predicated region
    $region14: #{tpu_custom_call.1} parent=1 // pred_check
      _
    $region15: #{tpu_custom_call.1} parent=1 // pred_check_branch
      %39 = sbr.rel (0) target = $region17
    $region16: #{tpu_custom_call.1} parent=1 // pred_region
      %41 = vsyncadd [#allocation5], 0
      %s42 = sshll.u32 %s3, 4
      %s43 = int_to_ptr.hbm [resolvable:$true] %s42
      %s44 = sshll.u32 [#allocation6], 4
      %s45 = int_to_ptr.vmem [resolvable:$true] %s44
      %50 = dma.hbm_to_vmem [thread:$0]  %s43, 128, %s45, [#allocation5], 64, 64, 4
    $region17: #{tpu_custom_call.1} parent=1 // pred_fallthru
      _
    // Predicated region
    $region18: #{tpu_custom_call.1} parent=1 // pred_check
      _
    $region19: #{tpu_custom_call.1} parent=1 // pred_check_branch
      %52 = sbr.rel (0) target = $region21
    $region20: #{tpu_custom_call.1} parent=1 // pred_region
      %54 = vsyncadd [#allocation8], 0
      %s55 = sshll.u32 %s4, 4
      %s56 = int_to_ptr.hbm [resolvable:$true] %s55
      %s57 = sshll.u32 [#allocation7], 4
      %s58 = int_to_ptr.vmem [resolvable:$true] %s57
      %63 = dma.hbm_to_vmem [thread:$0]  %s56, 256, %s58, [#allocation8], 64, 64, 4
    $region21: #{tpu_custom_call.1} parent=1 // pred_fallthru
      _
    // Predicated region
    $region22: #{tpu_custom_call.1} parent=1 // pred_check
      _
    $region23: #{tpu_custom_call.1} parent=1 // pred_check_branch
      %65 = sbr.rel (0) target = $region25
    $region24: #{tpu_custom_call.1} parent=1 // pred_region
      _
    $region25: #{tpu_custom_call.1} parent=1 // pred_fallthru
      _
    // Predicated region
    $region26: #{tpu_custom_call.1} parent=1 // pred_check
      _
    $region27: #{tpu_custom_call.1} parent=1 // pred_check_branch
      %67 = sbr.rel (0) target = $region29
    $region28: #{tpu_custom_call.1} parent=1 // pred_region
      %69 = dma.done [#allocation3], 64
    $region29: #{tpu_custom_call.1} parent=1 // pred_fallthru
      _
    // Predicated region
    $region30: #{tpu_custom_call.1} parent=1 // pred_check
      _
    $region31: #{tpu_custom_call.1} parent=1 // pred_check_branch
      %71 = sbr.rel (0) target = $region33
    $region32: #{tpu_custom_call.1} parent=1 // pred_region
      %73 = dma.done [#allocation5], 64
    $region33: #{tpu_custom_call.1} parent=1 // pred_fallthru
      _
    // Predicated region
    $region34: #{tpu_custom_call.1} parent=1 // pred_check
      _
    $region35: #{tpu_custom_call.1} parent=1 // pred_check_branch
      %75 = sbr.rel (0) target = $region37
    $region36: #{tpu_custom_call.1} parent=1 // pred_region
      %77 = dma.done [#allocation5], 128
    $region37: #{tpu_custom_call.1} parent=1 // pred_fallthru
      _
    // Predicated region
    $region38: #{tpu_custom_call.1} parent=1 // pred_check
      _
    $region39: #{tpu_custom_call.1} parent=1 // pred_check_branch
      %79 = sbr.rel (0) target = $region41
    $region40: #{tpu_custom_call.1} parent=1 // pred_region
      %81 = dma.done [#allocation8], 256
    $region41: #{tpu_custom_call.1} parent=1 // pred_fallthru
      _
    %v83 = vld [vmem:[#allocation2] sm:$0xf]
    %v84 = vld [vmem:[#allocation4] sm:$0xf]
    %v85 = vld [vmem:[%s2] sm:$0x1]
    %v87 = vperm.slane %v85, 0
    %vm89 = vcmask 64512
    %v91 = vsel %vm89, %v83, 0
    %vm93 = vcmask 1043456
    %v95 = vsel %vm93, %v84, 0
    %97 = vmatpush.bf16.msra.mxu0 0
    %98 = vmatpush.bf16.msra.mxu0 0
    %99 = vmatpush.bf16.msra.mxu0 0
    %100 = vmatpush.bf16.msra.mxu0 0
    %101 = vmatpush.bf16.msra.mxu0 0
    %102 = vmatpush.bf16.msra.mxu0 0
    %103 = vmatpush.bf16.msra.mxu0 0
    %104 = vmatpush.bf16.msra.mxu0 %v95
    %105 = vmatmul.bf16.gmra.mxu0 %v91
    %v106 = vpop.f32.mrf.mxu0
    %v107 = vadd.f32 %v87, %v106
    %v108 = vpop.f32.mrf.mxu0
    %109 = vdwg.mxu0
    %v110 = vxor.u32 %v107, 2147483648
    %v111 = vmul.f32 %v110, 1.442695
    %v112 = vpow.pop %v111
    %v113 = vadd.f32 %v112, 1.0
    %v114 = vrcp.pop %v113
    %v115 = vmul.f32 %v113, %v114
    %v116 = vsub.f32 1.0, %v115
    %v117 = vmul.f32 %v114, %v116
    %v118 = vadd.f32 %v114, %v117
    %vm119 = vweird.f32 %v113
    %vm120 = vweird.f32 %v114
    %vm121 = vmor %vm119, %vm120
    %v122 = vsel %vm121, %v114, %v118
    %v123 = vand.u32 2147483647, %v113
    %vm124 = vcmp.eq.f32.partialorder %v123, 8.507059e+37
    %v125 = vand.u32 %v113, 2147483648
    %v126 = vor.u32 1.1754944e-38, %v125
    %v127 = vsel %vm124, %v126, %v122
    %v128 = vmul.f32 1.0, %v127
    %v129 = vpack.c.bf16 %v128, %v128
    %v130 = vld [vmem:[#allocation6] sm:$0xf]
    %v131 = vld [vmem:[#allocation6 + $0x4] sm:$0xf]
    %v132 = vld [vmem:[#allocation7] sm:$0xf]
    %v133 = vld [vmem:[#allocation7 + $0x4] sm:$0xf]
    %v134 = vld [vmem:[#allocation7 + $0x8] sm:$0xf]
    %v135 = vld [vmem:[#allocation7 + $0xc] sm:$0xf]
    %v137 = vunpack.c.l.b16 %v83
    %v138 = vpack.c.b16 %v137, %v137
    %139 = vrot.lane.b32.xlu0 %v138, 120
    %v140 = vpop.permute.xlu0 %139
    %v145 = vunpack.c.l.b16 %v132
    %v146 = vunpack.c.l.b16 %v133
    %v147 = vunpack.c.l.b16 %v134
    %v148 = vunpack.c.l.b16 %v135
    %v149 = vpack.c.b16 %v146, %v145
    %v150 = vpack.c.b16 %v148, %v147
    %vm153 = vcmask 261120
    %v155 = vsel %vm153, %v140, 0
    %157 = vmatpush.bf16.msra.mxu0 0
    %158 = vmatpush.bf16.msra.mxu0 0
    %159 = vmatpush.bf16.msra.mxu0 0
    %160 = vmatpush.bf16.msra.mxu0 0
    %161 = vmatpush.bf16.msra.mxu0 0
    %162 = vmatpush.bf16.msra.mxu0 0
    %163 = vmatpush.bf16.msra.mxu0 %v150
    %164 = vmatpush.bf16.msra.mxu0 %v149
    %165 = vmatmul.bf16.gmra.mxu0 %v155
    %v166 = vpop.f32.mrf.mxu0
    %v167 = vadd.f32 0.0, %v166
    %v168 = vpop.f32.mrf.mxu0
    %169 = vdwg.mxu0
    %v172 = vunpack.c.l.b16 %v130
    %v173 = vunpack.c.l.b16 %v131
    %v174 = vpack.c.b16 %v173, %v172
    %vm176 = vcmask 130048
    %v178 = vsel %vm176, %v129, 0
    %180 = vmatpush.bf16.msra.mxu0 0
    %181 = vmatpush.bf16.msra.mxu0 0
    %182 = vmatpush.bf16.msra.mxu0 0
    %183 = vmatpush.bf16.msra.mxu0 0
    %184 = vmatpush.bf16.msra.mxu0 0
    %185 = vmatpush.bf16.msra.mxu0 0
    %186 = vmatpush.bf16.msra.mxu0 0
    %187 = vmatpush.bf16.msra.mxu0 %v174
    %188 = vmatmul.bf16.gmra.mxu0 %v178
    %v189 = vpop.f32.mrf.mxu0
    %v190 = vadd.f32 %v167, %v189
    %v191 = vpop.f32.mrf.mxu0
    %192 = vdwg.mxu0
    %v193 = vld [vmem:[%s5] sm:$0x1]
    %v195 = vperm.slane %v193, 0
    %v197 = vadd.f32 %v190, %v195
    %198 = vmax.xlane.f32.xlu0 %v197
    %v199 = vpop.xlane.xlu0 %198
    %v200 = vsub.f32 %v197, %v199
    %v201 = vmul.f32 %v200, 1.442695
    %v202 = vpow.pop %v201
    %203 = vadd.xlane.f32.xlu0 %v202
    %v204 = vpop.xlane.xlu0 %203
    %v205 = vlog2.pop %v204
    %v206 = vmul.f32 %v205, 0.6931472
    %v207 = vsub.f32 %v200, %v206
    %208 = vxpose.xlu0.b32.start [1/16] %v207, 128
    %209 = vxpose.xlu0.b32.cont [2/16] 0.0, 128
    %210 = vxpose.xlu0.b32.cont [3/16] 0.0, 128
    %211 = vxpose.xlu0.b32.cont [4/16] 0.0, 128
    %212 = vxpose.xlu0.b32.cont [5/16] 0.0, 128
    %213 = vxpose.xlu0.b32.cont [6/16] 0.0, 128
    %214 = vxpose.xlu0.b32.cont [7/16] 0.0, 128
    %215 = vxpose.xlu0.b32.cont [8/16] 0.0, 128
    %216 = vxpose.xlu0.b32.cont [9/16] 0.0, 128
    %217 = vxpose.xlu0.b32.cont [10/16] 0.0, 128
    %218 = vxpose.xlu0.b32.cont [11/16] 0.0, 128
    %219 = vxpose.xlu0.b32.cont [12/16] 0.0, 128
    %220 = vxpose.xlu0.b32.cont [13/16] 0.0, 128
    %221 = vxpose.xlu0.b32.cont [14/16] 0.0, 128
    %222 = vxpose.xlu0.b32.cont [15/16] 0.0, 128
    %223 = vxpose.xlu0.b32.end [16/16] 0.0, 128
    %v224 = vpop.trf.xlu0
    %v225 = vpop.trf.xlu0
    %v226 = vpop.trf.xlu0
    %v227 = vpop.trf.xlu0
    %v228 = vpop.trf.xlu0
    %v229 = vpop.trf.xlu0
    %v230 = vpop.trf.xlu0
    %v231 = vpop.trf.xlu0
    %v232 = vpop.trf.xlu0
    %v233 = vpop.trf.xlu0
    %v234 = vpop.trf.xlu0
    %v235 = vpop.trf.xlu0
    %v236 = vpop.trf.xlu0
    %v237 = vpop.trf.xlu0
    %v238 = vpop.trf.xlu0
    %v239 = vpop.trf.xlu0
    %v240 = vpack.c.bf16 %v224, %v224
    %v241 = vpack.c.bf16 %v225, %v225
    %vm242 = vcmask 60416
    %243 = vst.msk [vmem:[%s6] sm:$0xf] %vm242, %v240
    %vm244 = vcmask 57344
    %245 = vst.msk [vmem:[%s6 + $0x4] sm:$0x1] %vm244, %v241
    // Predicated region
    $region42: #{tpu_custom_call.1} parent=1 // pred_check
      _
    $region43: #{tpu_custom_call.1} parent=1 // pred_check_branch
      %247 = sbr.rel (0) target = $region45
    $region44: #{tpu_custom_call.1} parent=1 // pred_region
      _
    $region45: #{tpu_custom_call.1} parent=1 // pred_fallthru
      _
    // Predicated region
    $region46: #{tpu_custom_call.1} parent=1 // pred_check
      _
    $region47: #{tpu_custom_call.1} parent=1 // pred_check_branch
      %249 = sbr.rel (0) target = $region49
    $region48: #{tpu_custom_call.1} parent=1 // pred_region
      _
    $region49: #{tpu_custom_call.1} parent=1 // pred_fallthru
      _
    %250 = vsyncpa [#allocation3], 1
    %251 = vsyncpa [#allocation5], 1
    %252 = vsyncpa [#allocation8], 1

</llo_original>
